<compile_context>
chip_gen: v7x
topology: tpu7x:2x2x1
jax: 0.10.0
libtpu: 0.0.40
codegen_flags: <defaults>
</compile_context>

<pallas_src>
import functools

import jax
import jax.numpy as jnp
from jax import lax
from jax.experimental import pallas as pl
from jax.experimental.pallas import tpu as pltpu

_LANE = 128
_SUBLANE = 8
_NEG_INF = -1e30


def _round_up(n, m):
    return ((n + m - 1) // m) * m


def customnn_kernel(ids_ref, ew1_ref, b1_ref, w2t_ref, b2_ref, out_ref, *,
                    inv_seq):
    B, seq = ids_ref.shape
    vocab_p = ew1_ref.shape[0]
    wdtype = ew1_ref.dtype

    # ---- unscaled one-hot counts: counts[b, v] = #{s : ids[b, s] == v} ----
    lane_iota = lax.broadcasted_iota(jnp.int32, (B, vocab_p), 1)
    counts = jnp.zeros((B, vocab_p), jnp.float32)
    if seq <= 16:
        ids_all = ids_ref[...]                                # load once
        for s in range(seq):
            ids_s = ids_all[:, s:s + 1]                       # (B, 1) in-register
            counts = counts + (ids_s == lane_iota).astype(jnp.float32)
    else:
        def body(s, acc):
            ids_s = ids_ref[:, pl.ds(s, 1)]
            return acc + (ids_s == lane_iota).astype(jnp.float32)
        counts = lax.fori_loop(0, seq, body, counts, unroll=8)

    # ---- hidden = ReLU((counts @ (E @ W1^T)) / seq + b1), E@W1^T fused at prep ----
    hidden = jnp.dot(counts.astype(wdtype), ew1_ref[...],
                     preferred_element_type=jnp.float32)      # (B, hid_p)
    hidden = hidden * jnp.float32(inv_seq) + b1_ref[...]
    activated = jnp.maximum(hidden, 0.0)

    # ---- logits = activated @ W2^T + b2 (padded out lanes carry bias=-1e30) ----
    logits = jnp.dot(activated.astype(wdtype), w2t_ref[...],
                     preferred_element_type=jnp.float32) + b2_ref[...]

    # ---- log_softmax over the logit lanes ----
    m = jnp.max(logits, axis=-1, keepdims=True)
    shifted = logits - m
    lse = jnp.log(jnp.sum(jnp.exp(shifted), axis=-1, keepdims=True))
    out_ref[...] = shifted - lse                              # (B, out_p) lane-dense


def prepare_params(emb_table, w1, b1, w2, b2, param_dtype=jnp.bfloat16):
    """One-time host-side prep (NOT in the per-forward hot path): fuse the
    embedding table with the first Linear (EW1 = E @ W1^T in f32), transpose
    the output Linear, cast weights to param_dtype, and zero-pad all feature
    dims to lane width 128 so every kernel matmul operand and the output store
    is lane-dense. Biases stay f32 (the -1e30 padded-logit trick relies on a
    wide bias dtype)."""
    vocab, emb_dim = emb_table.shape
    hid = w1.shape[0]
    out = w2.shape[0]
    vocab_p = _round_up(vocab, _LANE)
    hid_p = _round_up(hid, _LANE)
    out_p = _round_up(out, _LANE)

    ew1 = jnp.dot(emb_table.astype(jnp.float32),
                  jnp.transpose(w1).astype(jnp.float32))       # (vocab, hid) f32
    ew1_pad = jnp.zeros((vocab_p, hid_p), param_dtype).at[:vocab, :hid].set(
        ew1.astype(param_dtype))
    w2t_pad = jnp.zeros((hid_p, out_p), param_dtype).at[:hid, :out].set(
        jnp.transpose(w2).astype(param_dtype))
    b1_pad = jnp.zeros((1, hid_p), jnp.float32).at[:, :hid].set(
        b1.reshape(1, hid).astype(jnp.float32))
    # Padded output lanes get a huge negative bias so they vanish in softmax.
    b2_pad = jnp.full((1, out_p), _NEG_INF, jnp.float32).at[:, :out].set(
        b2.reshape(1, out).astype(jnp.float32))

    return dict(ew1=ew1_pad, b1=b1_pad, w2t=w2t_pad, b2=b2_pad,
                vocab=vocab, out=out)


def customnn_forward_batch(word_ids_batch, params, *, tile_b=128):
    """word_ids_batch: int32 [B, seq]. Returns log-softmax outputs [B, out]."""
    B, seq = word_ids_batch.shape
    assert seq > 0, "empty word sequence"
    ew1, b1 = params["ew1"], params["b1"]
    w2t, b2 = params["w2t"], params["b2"]
    vocab_p, hid_p = ew1.shape
    out_p = w2t.shape[1]
    out = params["out"]

    # Batch tile: multiple of the 8-row sublane, at most tile_b.
    tile_b = max(_SUBLANE, _round_up(min(tile_b, B), _SUBLANE))
    B_p = _round_up(B, tile_b)
    grid_b = B_p // tile_b

    ids = word_ids_batch.astype(jnp.int32)
    if B_p != B:  # pad only when actually needed (keeps hot path op-free)
        ids = jnp.zeros((B_p, seq), jnp.int32).at[:B, :].set(ids)

    # VMEM budget: double-buffered resident weights + double-buffered ids/out
    # tiles + counts/cast scratch + margin (stays well under 16/32 MiB scoped
    # defaults on v5e/v6e/v7x at these shapes).
    weight_bytes = sum(int(a.size) * a.dtype.itemsize for a in (ew1, b1, w2t, b2))
    io_bytes = 2 * (tile_b * seq * 4 + tile_b * out_p * 4)
    scratch_bytes = 2 * tile_b * vocab_p * 4
    vmem_limit = int(max(4 * 1024 * 1024,
                         2 * weight_bytes + io_bytes + scratch_bytes + (2 << 20)))

    kernel = functools.partial(customnn_kernel, inv_seq=1.0 / seq)

    result = pl.pallas_call(
        kernel,
        out_shape=jax.ShapeDtypeStruct((B_p, out_p), jnp.float32),
        grid=(grid_b,),
        in_specs=[
            pl.BlockSpec((tile_b, seq), lambda i: (i, 0)),       # ids: walks batch
            pl.BlockSpec((vocab_p, hid_p), lambda i: (0, 0)),    # EW1: VMEM-resident
            pl.BlockSpec((1, hid_p), lambda i: (0, 0)),          # b1
            pl.BlockSpec((hid_p, out_p), lambda i: (0, 0)),      # W2^T
            pl.BlockSpec((1, out_p), lambda i: (0, 0)),          # b2
        ],
        out_specs=pl.BlockSpec((tile_b, out_p), lambda i: (i, 0)),
        compiler_params=pltpu.CompilerParams(
            dimension_semantics=("parallel",),                   # v7x: 2 TCs
            vmem_limit_bytes=vmem_limit),
    )(ids, ew1, b1, w2t, b2)

    if B_p != B:
        result = result[:B]
    if out_p != out:
        result = result[:, :out]
    return result


def customnn_forward(word_ids, params):
    """Single-sequence forward matching the PyTorch module's semantics:
    word_ids int32 [seq] -> log-softmax output [out]."""
    return customnn_forward_batch(word_ids[None, :], params)[0]


def _reference(word_ids, emb_table, w1, b1, w2, b2):
    x_new = jnp.mean(emb_table[word_ids], axis=0)
    hidden = jnp.maximum(w1 @ x_new + b1, 0.0)
    logits = w2 @ hidden + b2
    return jax.nn.log_softmax(logits, axis=0)


if __name__ == "__main__":
    key = jax.random.PRNGKey(0)
    k_emb, k_w1, k_b1, k_w2, k_b2, k_ids, k_ids2 = jax.random.split(key, 7)

    vocab, emb_dim, hid, out, seq, batch = 32, 32, 32, 8, 8, 8

    # Deterministic parameter init (shapes per nn.Linear / embedding layer).
    emb_table = jax.random.normal(k_emb, (vocab, emb_dim), jnp.float32)
    # Xavier-uniform for h.weight (matches nn.init.xavier_uniform_).
    xav = (6.0 / (emb_dim + hid)) ** 0.5
    w1 = jax.random.uniform(k_w1, (hid, emb_dim), jnp.float32, -xav, xav)
    b1 = jax.random.uniform(k_b1, (hid,), jnp.float32,
                            -1.0 / emb_dim ** 0.5, 1.0 / emb_dim ** 0.5)
    # Default PyTorch Linear init (uniform +-1/sqrt(fan_in)) for output layer.
    w2 = jax.random.uniform(k_w2, (out, hid), jnp.float32,
                            -1.0 / hid ** 0.5, 1.0 / hid ** 0.5)
    b2 = jax.random.uniform(k_b2, (out,), jnp.float32,
                            -1.0 / hid ** 0.5, 1.0 / hid ** 0.5)

    # One-time prep: f32 variant (bit-tight check) and bf16 default variant
    # (half the weight DMA / VMEM residency; MXU fast path).
    params_f32 = prepare_params(emb_table, w1, b1, w2, b2,
                                param_dtype=jnp.float32)
    params_bf16 = prepare_params(emb_table, w1, b1, w2, b2)

    ref_fn = jax.vmap(lambda ids: _reference(ids, emb_table, w1, b1, w2, b2))

    # Small batched forward.
    ids_batch = jax.random.randint(k_ids, (batch, seq), 0, vocab, jnp.int32)
    y_ref = ref_fn(ids_batch)

    y_f32 = jax.block_until_ready(customnn_forward_batch(ids_batch, params_f32))
    assert y_f32.shape == (batch, out)
    assert jnp.allclose(y_f32, y_ref, atol=1e-4, rtol=1e-4), (y_f32, y_ref)

    y_bf16 = jax.block_until_ready(customnn_forward_batch(ids_batch, params_bf16))
    assert y_bf16.shape == (batch, out)
    assert jnp.allclose(y_bf16, y_ref, atol=7.5e-2, rtol=7.5e-2), (y_bf16, y_ref)

    # Larger batch exercises the 1-D batch grid: weights stay VMEM-resident
    # across grid steps, ids/out tiles pipeline, axis is "parallel".
    big_batch = 256
    ids_big = jax.random.randint(k_ids2, (big_batch, seq), 0, vocab, jnp.int32)
    y_big = jax.block_until_ready(
        customnn_forward_batch(ids_big, params_f32, tile_b=128))
    assert y_big.shape == (big_batch, out)
    assert jnp.allclose(y_big, ref_fn(ids_big), atol=1e-4, rtol=1e-4)

    # Single-sequence forward (original module semantics).
    y_single = jax.block_until_ready(customnn_forward(ids_batch[0], params_f32))
    assert y_single.shape == (out,)
    assert jnp.allclose(y_single, y_ref[0], atol=1e-4, rtol=1e-4), (
        y_single, y_ref[0])

    print("KERNEL_OK")
</pallas_src>

<mosaic_0001>
module attributes {stable_mosaic.version = 11 : i64} {
  func.func @customnn_kernel(%arg0: i32, %arg1: memref<8x8xi32, #tpu.memory_space<vmem>>, %arg2: memref<128x128xf32, #tpu.memory_space<vmem>>, %arg3: memref<1x128xf32, #tpu.memory_space<vmem>>, %arg4: memref<128x128xf32, #tpu.memory_space<vmem>>, %arg5: memref<1x128xf32, #tpu.memory_space<vmem>>, %arg6: memref<8x128xf32, #tpu.memory_space<vmem>>) attributes {dimension_semantics = [#tpu.dimension_semantics<parallel>], iteration_bounds = array<i64: 1>, scalar_prefetch = 0 : i64, scratch_operands = 0 : i64, tpu.core_type = #tpu.core_type<tc>, window_params = [{transform_indices = @transform_0, window_bounds = array<i64: 8, 8>}, {pipeline_mode = #tpu.pipeline_mode<synchronous>, transform_indices = @transform_1, window_bounds = array<i64: 128, 128>}, {pipeline_mode = #tpu.pipeline_mode<synchronous>, transform_indices = @transform_2, window_bounds = array<i64: 1, 128>}, {pipeline_mode = #tpu.pipeline_mode<synchronous>, transform_indices = @transform_3, window_bounds = array<i64: 128, 128>}, {pipeline_mode = #tpu.pipeline_mode<synchronous>, transform_indices = @transform_4, window_bounds = array<i64: 1, 128>}, {transform_indices = @transform_5, window_bounds = array<i64: 8, 128>}]} {
    %0 = tpu.iota {dimensions = array<i32: 1>} : vector<8x128xi32>
    %cst = arith.constant 0.000000e+00 : f32
    %1 = vector.broadcast %cst : f32 to vector<8x128xf32>
    %c0 = arith.constant 0 : index
    %c0_0 = arith.constant 0 : index
    %2 = vector.load %arg1[%c0, %c0_0] : memref<8x8xi32, #tpu.memory_space<vmem>>, vector<8x8xi32>
    %3 = vector.extract_strided_slice %2 {offsets = [0, 0], sizes = [8, 1], strides = [1, 1]} : vector<8x8xi32> to vector<8x1xi32>
    %4 = vector.broadcast %3 : vector<8x1xi32> to vector<8x128xi32>
    %5 = arith.cmpi eq, %4, %0 : vector<8x128xi32>
    %6 = arith.extui %5 : vector<8x128xi1> to vector<8x128xi32>
    %7 = arith.sitofp %6 : vector<8x128xi32> to vector<8x128xf32>
    %8 = arith.addf %1, %7 : vector<8x128xf32>
    %9 = vector.extract_strided_slice %2 {offsets = [0, 1], sizes = [8, 1], strides = [1, 1]} : vector<8x8xi32> to vector<8x1xi32>
    %10 = vector.broadcast %9 : vector<8x1xi32> to vector<8x128xi32>
    %11 = arith.cmpi eq, %10, %0 : vector<8x128xi32>
    %12 = arith.extui %11 : vector<8x128xi1> to vector<8x128xi32>
    %13 = arith.sitofp %12 : vector<8x128xi32> to vector<8x128xf32>
    %14 = arith.addf %8, %13 : vector<8x128xf32>
    %15 = vector.extract_strided_slice %2 {offsets = [0, 2], sizes = [8, 1], strides = [1, 1]} : vector<8x8xi32> to vector<8x1xi32>
    %16 = vector.broadcast %15 : vector<8x1xi32> to vector<8x128xi32>
    %17 = arith.cmpi eq, %16, %0 : vector<8x128xi32>
    %18 = arith.extui %17 : vector<8x128xi1> to vector<8x128xi32>
    %19 = arith.sitofp %18 : vector<8x128xi32> to vector<8x128xf32>
    %20 = arith.addf %14, %19 : vector<8x128xf32>
    %21 = vector.extract_strided_slice %2 {offsets = [0, 3], sizes = [8, 1], strides = [1, 1]} : vector<8x8xi32> to vector<8x1xi32>
    %22 = vector.broadcast %21 : vector<8x1xi32> to vector<8x128xi32>
    %23 = arith.cmpi eq, %22, %0 : vector<8x128xi32>
    %24 = arith.extui %23 : vector<8x128xi1> to vector<8x128xi32>
    %25 = arith.sitofp %24 : vector<8x128xi32> to vector<8x128xf32>
    %26 = arith.addf %20, %25 : vector<8x128xf32>
    %27 = vector.extract_strided_slice %2 {offsets = [0, 4], sizes = [8, 1], strides = [1, 1]} : vector<8x8xi32> to vector<8x1xi32>
    %28 = vector.broadcast %27 : vector<8x1xi32> to vector<8x128xi32>
    %29 = arith.cmpi eq, %28, %0 : vector<8x128xi32>
    %30 = arith.extui %29 : vector<8x128xi1> to vector<8x128xi32>
    %31 = arith.sitofp %30 : vector<8x128xi32> to vector<8x128xf32>
    %32 = arith.addf %26, %31 : vector<8x128xf32>
    %33 = vector.extract_strided_slice %2 {offsets = [0, 5], sizes = [8, 1], strides = [1, 1]} : vector<8x8xi32> to vector<8x1xi32>
    %34 = vector.broadcast %33 : vector<8x1xi32> to vector<8x128xi32>
    %35 = arith.cmpi eq, %34, %0 : vector<8x128xi32>
    %36 = arith.extui %35 : vector<8x128xi1> to vector<8x128xi32>
    %37 = arith.sitofp %36 : vector<8x128xi32> to vector<8x128xf32>
    %38 = arith.addf %32, %37 : vector<8x128xf32>
    %39 = vector.extract_strided_slice %2 {offsets = [0, 6], sizes = [8, 1], strides = [1, 1]} : vector<8x8xi32> to vector<8x1xi32>
    %40 = vector.broadcast %39 : vector<8x1xi32> to vector<8x128xi32>
    %41 = arith.cmpi eq, %40, %0 : vector<8x128xi32>
    %42 = arith.extui %41 : vector<8x128xi1> to vector<8x128xi32>
    %43 = arith.sitofp %42 : vector<8x128xi32> to vector<8x128xf32>
    %44 = arith.addf %38, %43 : vector<8x128xf32>
    %45 = vector.extract_strided_slice %2 {offsets = [0, 7], sizes = [8, 1], strides = [1, 1]} : vector<8x8xi32> to vector<8x1xi32>
    %46 = vector.broadcast %45 : vector<8x1xi32> to vector<8x128xi32>
    %47 = arith.cmpi eq, %46, %0 : vector<8x128xi32>
    %48 = arith.extui %47 : vector<8x128xi1> to vector<8x128xi32>
    %49 = arith.sitofp %48 : vector<8x128xi32> to vector<8x128xf32>
    %50 = arith.addf %44, %49 : vector<8x128xf32>
    %c0_1 = arith.constant 0 : index
    %c0_2 = arith.constant 0 : index
    %51 = vector.load %arg2[%c0_1, %c0_2] : memref<128x128xf32, #tpu.memory_space<vmem>>, vector<128x128xf32>
    %cst_3 = arith.constant dense<0.000000e+00> : vector<8x128xf32>
    %52 = tpu.matmul %50, %51, %cst_3 {dimension_numbers = #tpu.dot_dimension_numbers<[1], [0], [0], [1], [0, 0, 1, 1], [], []>} : vector<8x128xf32>, vector<128x128xf32>, vector<8x128xf32> -> vector<8x128xf32>
    %cst_4 = arith.constant 1.250000e-01 : f32
    %53 = vector.broadcast %cst_4 : f32 to vector<8x128xf32>
    %54 = arith.mulf %52, %53 : vector<8x128xf32>
    %c0_5 = arith.constant 0 : index
    %c0_6 = arith.constant 0 : index
    %55 = vector.load %arg3[%c0_5, %c0_6] : memref<1x128xf32, #tpu.memory_space<vmem>>, vector<1x128xf32>
    %56 = vector.broadcast %55 : vector<1x128xf32> to vector<8x128xf32>
    %57 = arith.addf %54, %56 : vector<8x128xf32>
    %cst_7 = arith.constant 0.000000e+00 : f32
    %58 = vector.broadcast %cst_7 : f32 to vector<8x128xf32>
    %59 = arith.maximumf %57, %58 : vector<8x128xf32>
    %c0_8 = arith.constant 0 : index
    %c0_9 = arith.constant 0 : index
    %60 = vector.load %arg4[%c0_8, %c0_9] : memref<128x128xf32, #tpu.memory_space<vmem>>, vector<128x128xf32>
    %cst_10 = arith.constant dense<0.000000e+00> : vector<8x128xf32>
    %61 = tpu.matmul %59, %60, %cst_10 {dimension_numbers = #tpu.dot_dimension_numbers<[1], [0], [0], [1], [0, 0, 1, 1], [], []>} : vector<8x128xf32>, vector<128x128xf32>, vector<8x128xf32> -> vector<8x128xf32>
    %c0_11 = arith.constant 0 : index
    %c0_12 = arith.constant 0 : index
    %62 = vector.load %arg5[%c0_11, %c0_12] : memref<1x128xf32, #tpu.memory_space<vmem>>, vector<1x128xf32>
    %63 = vector.broadcast %62 : vector<1x128xf32> to vector<8x128xf32>
    %64 = arith.addf %61, %63 : vector<8x128xf32>
    %cst_13 = arith.constant dense<0xFF800000> : vector<8xf32>
    %65 = vector.multi_reduction <maximumf>, %64, %cst_13 [1] : vector<8x128xf32> to vector<8xf32>
    %66 = vector.shape_cast %65 : vector<8xf32> to vector<8x1xf32>
    %67 = vector.broadcast %66 : vector<8x1xf32> to vector<8x128xf32>
    %68 = arith.subf %64, %67 : vector<8x128xf32>
    %69 = math.exp %68 : vector<8x128xf32>
    %cst_14 = arith.constant dense<0.000000e+00> : vector<8xf32>
    %70 = vector.multi_reduction <add>, %69, %cst_14 [1] : vector<8x128xf32> to vector<8xf32>
    %71 = vector.shape_cast %70 : vector<8xf32> to vector<8x1xf32>
    %72 = math.log %71 : vector<8x1xf32>
    %73 = vector.broadcast %72 : vector<8x1xf32> to vector<8x128xf32>
    %74 = arith.subf %68, %73 : vector<8x128xf32>
    %c0_15 = arith.constant 0 : index
    %c0_16 = arith.constant 0 : index
    %75 = vector.load %arg6[%c0_15, %c0_16] : memref<8x128xf32, #tpu.memory_space<vmem>>, vector<8x128xf32>
    tpu.vector_store %arg6[%c0_15, %c0_16], %74 {strides = array<i32>} : memref<8x128xf32, #tpu.memory_space<vmem>>, vector<8x128xf32>,
    return
  }
  func.func @transform_0(%arg0: i32) -> (i32, i32) {
    %c0_i32 = arith.constant 0 : i32
    %c0_i32_0 = arith.constant 0 : i32
    return %arg0, %c0_i32 : i32, i32
  }
  func.func @transform_1(%arg0: i32) -> (i32, i32) {
    %c0_i32 = arith.constant 0 : i32
    %c0_i32_0 = arith.constant 0 : i32
    %c0_i32_1 = arith.constant 0 : i32
    return %c0_i32, %c0_i32_0 : i32, i32
  }
  func.func @transform_2(%arg0: i32) -> (i32, i32) {
    %c0_i32 = arith.constant 0 : i32
    %c0_i32_0 = arith.constant 0 : i32
    %c0_i32_1 = arith.constant 0 : i32
    return %c0_i32, %c0_i32_0 : i32, i32
  }
  func.func @transform_3(%arg0: i32) -> (i32, i32) {
    %c0_i32 = arith.constant 0 : i32
    %c0_i32_0 = arith.constant 0 : i32
    %c0_i32_1 = arith.constant 0 : i32
    return %c0_i32, %c0_i32_0 : i32, i32
  }
  func.func @transform_4(%arg0: i32) -> (i32, i32) {
    %c0_i32 = arith.constant 0 : i32
    %c0_i32_0 = arith.constant 0 : i32
    %c0_i32_1 = arith.constant 0 : i32
    return %c0_i32, %c0_i32_0 : i32, i32
  }
  func.func @transform_5(%arg0: i32) -> (i32, i32) {
    %c0_i32 = arith.constant 0 : i32
    %c0_i32_0 = arith.constant 0 : i32
    return %arg0, %c0_i32 : i32, i32
  }
}

</mosaic_0001>

<llo_original>
// kernel: tpu_custom_call.1
$region0: #{tpu_custom_call.1}
  #allocation0 [shape = 'u32[]', space=smem, size = 0x4, offset = 0x4, fixed_abs, tag = 'smem constant byte address 0x4 - core index']
  #allocation1 [shape = 'u32[144,128]{1,0:T(1,128)}', space=vmem, size = 0x12000, scoped, tag = 'internal scratch']
  %s0 = inlined_call_operand.hbm [shape: s32[8,8], index: 0, kind: input, shape index: {}]
  %s1 = inlined_call_operand.hbm [shape: f32[128,128], index: 1, kind: input, shape index: {}]
  %s2 = inlined_call_operand.vmem [shape: f32[1,128], index: 2, kind: input, shape index: {}]
  %s3 = inlined_call_operand.hbm [shape: f32[128,128], index: 3, kind: input, shape index: {}]
  %s4 = inlined_call_operand.vmem [shape: f32[1,128], index: 4, kind: input, shape index: {}]
  %s5 = inlined_call_operand.hbm [shape: f32[8,128], index: 5, kind: output, shape index: {}]
  %s6 = sld [smem:[#allocation0]]
  $region42: #{tpu_custom_call.1} parent=0
    _
  %s8 = ssub.s32 1, %s6
  %s9 = scalar_select 0, %s8, %s6
  $region1: #{tpu_custom_call.1} parent=0
    #allocation2 [shape = 'u8[4096]{0}', space=vmem, size = 0x1000, scoped, tag = 'input window, operand 0, single buffered']
    #allocation3 [shape = 's32[1]{0}', space=sflag, size = 0x4, scoped, tag = 'scoped memory for tpu_custom_call.1']
    #allocation4 [shape = 's32[1]{0}', space=sflag, size = 0x4, scoped, tag = 'scoped memory for tpu_custom_call.1']
    #allocation5 [shape = 'u8[65536]{0}', space=vmem, size = 0x10000, scoped, tag = 'input window, operand 1, single buffered']
    #allocation6 [shape = 's32[1]{0}', space=sflag, size = 0x4, scoped, tag = 'scoped memory for tpu_custom_call.1']
    #allocation7 [shape = 'u8[65536]{0}', space=vmem, size = 0x10000, scoped, tag = 'input window, operand 3, single buffered']
    #allocation8 [shape = 'u8[4096]{0}', space=vmem, size = 0x1000, scoped, tag = 'output window, operand 0, single buffered']
    %10 = vsyncpa [#allocation3], 0
    %11 = vsyncpa [#allocation6], 0
    %12 = vsyncpa [#allocation4], 0
    // Predicated region
    $region2: #{tpu_custom_call.1} parent=1 // pred_check
      _
    $region3: #{tpu_custom_call.1} parent=1 // pred_check_branch
      %14 = sbr.rel (0) target = $region5
    $region4: #{tpu_custom_call.1} parent=1 // pred_region
      %s16 = ssub.s32 128, 128
      %17 = vsyncadd [#allocation3], %s16
      %s19 = sshll.u32 [#allocation2], 4
      %s20 = int_to_ptr.vmem [resolvable:$true] %s19
      %22 = dma.hbm_to_vmem [thread:$0]  %s0, 128, %s20, [#allocation3]
    $region5: #{tpu_custom_call.1} parent=1 // pred_fallthru
      _
    // Predicated region
    $region6: #{tpu_custom_call.1} parent=1 // pred_check
      _
    $region7: #{tpu_custom_call.1} parent=1 // pred_check_branch
      %24 = sbr.rel (0) target = $region9
    $region8: #{tpu_custom_call.1} parent=1 // pred_region
      %s26 = ssub.s32 2048, 2048
      %27 = vsyncadd [#allocation6], %s26
      %s28 = sshll.u32 [#allocation5], 4
      %s29 = int_to_ptr.vmem [resolvable:$true] %s28
      %34 = dma.hbm_to_vmem [thread:$0]  %s1, 2048, %s29, [#allocation6], 128, 128, 8
    $region9: #{tpu_custom_call.1} parent=1 // pred_fallthru
      _
    // Predicated region
    $region10: #{tpu_custom_call.1} parent=1 // pred_check
      _
    $region11: #{tpu_custom_call.1} parent=1 // pred_check_branch
      %36 = sbr.rel (0) target = $region13
    $region12: #{tpu_custom_call.1} parent=1 // pred_region
      _
    $region13: #{tpu_custom_call.1} parent=1 // pred_fallthru
      _
    // Predicated region
    $region14: #{tpu_custom_call.1} parent=1 // pred_check
      _
    $region15: #{tpu_custom_call.1} parent=1 // pred_check_branch
      %38 = sbr.rel (0) target = $region17
    $region16: #{tpu_custom_call.1} parent=1 // pred_region
      %s40 = ssub.s32 2048, 2048
      %41 = vsyncadd [#allocation6], %s40
      %s42 = sshll.u32 [#allocation7], 4
      %s43 = int_to_ptr.vmem [resolvable:$true] %s42
      %48 = dma.hbm_to_vmem [thread:$0]  %s3, 2048, %s43, [#allocation6], 128, 128, 8
    $region17: #{tpu_custom_call.1} parent=1 // pred_fallthru
      _
    // Predicated region
    $region18: #{tpu_custom_call.1} parent=1 // pred_check
      _
    $region19: #{tpu_custom_call.1} parent=1 // pred_check_branch
      %50 = sbr.rel (0) target = $region21
    $region20: #{tpu_custom_call.1} parent=1 // pred_region
      _
    $region21: #{tpu_custom_call.1} parent=1 // pred_fallthru
      _
    // Predicated region
    $region22: #{tpu_custom_call.1} parent=1 // pred_check
      _
    $region23: #{tpu_custom_call.1} parent=1 // pred_check_branch
      %52 = sbr.rel (0) target = $region25
    $region24: #{tpu_custom_call.1} parent=1 // pred_region
      %53 = dma.done [#allocation3], 128
    $region25: #{tpu_custom_call.1} parent=1 // pred_fallthru
      _
    // Predicated region
    $region26: #{tpu_custom_call.1} parent=1 // pred_check
      _
    $region27: #{tpu_custom_call.1} parent=1 // pred_check_branch
      %55 = sbr.rel (0) target = $region29
    $region28: #{tpu_custom_call.1} parent=1 // pred_region
      %56 = dma.done [#allocation6], 2048
    $region29: #{tpu_custom_call.1} parent=1 // pred_fallthru
      _
    // Predicated region
    $region30: #{tpu_custom_call.1} parent=1 // pred_check
      _
    $region31: #{tpu_custom_call.1} parent=1 // pred_check_branch
      %58 = sbr.rel (0) target = $region33
    $region32: #{tpu_custom_call.1} parent=1 // pred_region
      %59 = dma.done [#allocation6], 2048
    $region33: #{tpu_custom_call.1} parent=1 // pred_fallthru
      _
    %v60 = vlaneseq
    %v61 = vand.u32 %v60, 127
    %v62 = vld [vmem:[#allocation2] sm:$0xff]
    %63 = vset.pattern.permute.xlu0 0
    %64 = vperm.xlu0 %63, %v62
    %v65 = vpop.permute.xlu0 %64
    %vm66 = vcmp.eq.s32.totalorder %v65, %v61
    %v67 = vsel %vm66, 1, 0
    %v68 = vcvt.s32.f32 %v67
    %v69 = vadd.f32 %v68, 0.0
    %70 = vset.pattern.permute.xlu0 1
    %71 = vperm.xlu0 %70, %v62
    %v72 = vpop.permute.xlu0 %71
    %vm73 = vcmp.eq.s32.totalorder %v72, %v61
    %v74 = vsel %vm73, 1, 0
    %v75 = vcvt.s32.f32 %v74
    %v76 = vadd.f32 %v69, %v75
    %77 = vset.pattern.permute.xlu0 2
    %78 = vperm.xlu0 %77, %v62
    %v79 = vpop.permute.xlu0 %78
    %vm80 = vcmp.eq.s32.totalorder %v79, %v61
    %v81 = vsel %vm80, 1, 0
    %v82 = vcvt.s32.f32 %v81
    %v83 = vadd.f32 %v76, %v82
    %84 = vset.pattern.permute.xlu0 3
    %85 = vperm.xlu0 %84, %v62
    %v86 = vpop.permute.xlu0 %85
    %vm87 = vcmp.eq.s32.totalorder %v86, %v61
    %v88 = vsel %vm87, 1, 0
    %v89 = vcvt.s32.f32 %v88
    %v90 = vadd.f32 %v83, %v89
    %91 = vset.pattern.permute.xlu0 4
    %92 = vperm.xlu0 %91, %v62
    %v93 = vpop.permute.xlu0 %92
    %vm94 = vcmp.eq.s32.totalorder %v93, %v61
    %v95 = vsel %vm94, 1, 0
    %v96 = vcvt.s32.f32 %v95
    %v97 = vadd.f32 %v90, %v96
    %98 = vset.pattern.permute.xlu0 5
    %99 = vperm.xlu0 %98, %v62
    %v100 = vpop.permute.xlu0 %99
    %vm101 = vcmp.eq.s32.totalorder %v100, %v61
    %v102 = vsel %vm101, 1, 0
    %v103 = vcvt.s32.f32 %v102
    %v104 = vadd.f32 %v97, %v103
    %105 = vset.pattern.permute.xlu0 6
    %106 = vperm.xlu0 %105, %v62
    %v107 = vpop.permute.xlu0 %106
    %vm108 = vcmp.eq.s32.totalorder %v107, %v61
    %v109 = vsel %vm108, 1, 0
    %v110 = vcvt.s32.f32 %v109
    %v111 = vadd.f32 %v104, %v110
    %112 = vset.pattern.permute.xlu0 7
    %113 = vperm.xlu0 %112, %v62
    %v114 = vpop.permute.xlu0 %113
    %vm115 = vcmp.eq.s32.totalorder %v114, %v61
    %v116 = vsel %vm115, 1, 0
    %v117 = vcvt.s32.f32 %v116
    %v118 = vadd.f32 %v111, %v117
    %v119 = vld [vmem:[#allocation5] sm:$0xff]
    %v120 = vld [vmem:[#allocation5 + $0x8] sm:$0xff]
    %v121 = vld [vmem:[#allocation5 + $0x10] sm:$0xff]
    %v122 = vld [vmem:[#allocation5 + $0x18] sm:$0xff]
    %v123 = vld [vmem:[#allocation5 + $0x20] sm:$0xff]
    %v124 = vld [vmem:[#allocation5 + $0x28] sm:$0xff]
    %v125 = vld [vmem:[#allocation5 + $0x30] sm:$0xff]
    %v126 = vld [vmem:[#allocation5 + $0x38] sm:$0xff]
    %v127 = vld [vmem:[#allocation5 + $0x40] sm:$0xff]
    %v128 = vld [vmem:[#allocation5 + $0x48] sm:$0xff]
    %v129 = vld [vmem:[#allocation5 + $0x50] sm:$0xff]
    %v130 = vld [vmem:[#allocation5 + $0x58] sm:$0xff]
    %v131 = vld [vmem:[#allocation5 + $0x60] sm:$0xff]
    %v132 = vld [vmem:[#allocation5 + $0x68] sm:$0xff]
    %v133 = vld [vmem:[#allocation5 + $0x70] sm:$0xff]
    %v134 = vld [vmem:[#allocation5 + $0x78] sm:$0xff]
    %135 = vmatprep.subr.mxu0 0.0
    %136 = vmatpush1.msra.mxu0 %v119
    %137 = vmatprep.subr.mxu0 0.0
    %138 = vmatpush1.msra.mxu0 %v120
    %139 = vmatprep.subr.mxu0 0.0
    %140 = vmatpush1.msra.mxu0 %v121
    %141 = vmatprep.subr.mxu0 0.0
    %142 = vmatpush1.msra.mxu0 %v122
    %143 = vmatprep.subr.mxu0 0.0
    %144 = vmatpush1.msra.mxu0 %v123
    %145 = vmatprep.subr.mxu0 0.0
    %146 = vmatpush1.msra.mxu0 %v124
    %147 = vmatprep.subr.mxu0 0.0
    %148 = vmatpush1.msra.mxu0 %v125
    %149 = vmatprep.subr.mxu0 0.0
    %150 = vmatpush1.msra.mxu0 %v126
    %151 = vmatprep.subr.mxu0 0.0
    %152 = vmatpush1.msra.mxu0 %v127
    %153 = vmatprep.subr.mxu0 0.0
    %154 = vmatpush1.msra.mxu0 %v128
    %155 = vmatprep.subr.mxu0 0.0
    %156 = vmatpush1.msra.mxu0 %v129
    %157 = vmatprep.subr.mxu0 0.0
    %158 = vmatpush1.msra.mxu0 %v130
    %159 = vmatprep.subr.mxu0 0.0
    %160 = vmatpush1.msra.mxu0 %v131
    %161 = vmatprep.subr.mxu0 0.0
    %162 = vmatpush1.msra.mxu0 %v132
    %163 = vmatprep.subr.mxu0 0.0
    %164 = vmatpush1.msra.mxu0 %v133
    %165 = vmatprep.subr.mxu0 0.0
    %166 = vmatpush1.msra.mxu0 %v134
    %167 = vmatprep.subr.mxu0 0.0
    %168 = vmatpush1.msra.mxu0 0.0
    %169 = vmatprep.subr.mxu0 0.0
    %170 = vmatpush1.msra.mxu0 0.0
    %171 = vmatprep.subr.mxu0 0.0
    %172 = vmatpush1.msra.mxu0 0.0
    %173 = vmatprep.subr.mxu0 0.0
    %174 = vmatpush1.msra.mxu0 0.0
    %175 = vmatprep.subr.mxu0 0.0
    %176 = vmatpush1.msra.mxu0 0.0
    %177 = vmatprep.subr.mxu0 0.0
    %178 = vmatpush1.msra.mxu0 0.0
    %179 = vmatprep.subr.mxu0 0.0
    %180 = vmatpush1.msra.mxu0 0.0
    %181 = vmatprep.subr.mxu0 0.0
    %182 = vmatpush1.msra.mxu0 0.0
    %183 = vmatprep.subr.mxu0 0.0
    %184 = vmatpush1.msra.mxu0 0.0
    %185 = vmatprep.subr.mxu0 0.0
    %186 = vmatpush1.msra.mxu0 0.0
    %187 = vmatprep.subr.mxu0 0.0
    %188 = vmatpush1.msra.mxu0 0.0
    %189 = vmatprep.subr.mxu0 0.0
    %190 = vmatpush1.msra.mxu0 0.0
    %191 = vmatprep.subr.mxu0 0.0
    %192 = vmatpush1.msra.mxu0 0.0
    %193 = vmatprep.subr.mxu0 0.0
    %194 = vmatpush1.msra.mxu0 0.0
    %195 = vmatprep.subr.mxu0 0.0
    %196 = vmatpush1.msra.mxu0 0.0
    %197 = vmatprep.subr.mxu0 0.0
    %198 = vmatpush1.msra.mxu0 0.0
    %199 = vmatprep.mubr.f32.mxu0 0.0
    %200 = vmatmul.mubr.f32.gmra.mrb[0].mxu0 %v118
    %v201 = vpop.f32.mrb[0].mxu0
    %v202 = vadd.f32 0.0, %v201
    %v203 = vpop.f32.mrb[0].mxu0
    %204 = vdwg.mxu0
    %v205 = vmul.f32 %v202, 0.125
    %v206 = vld [vmem:[%s2] sm:$0x1]
    %v208 = vlaneseq
    %v209 = vshrl.u32 %v208, 7
    %v210 = vsub.s32 0, %v209
    %v211 = vrot.slane %v206, %v210
    %v213 = vadd.f32 %v205, %v211
    %v214 = vmax.f32 %v213, 0.0
    %v215 = vld [vmem:[#allocation7] sm:$0xff]
    %v216 = vld [vmem:[#allocation7 + $0x8] sm:$0xff]
    %v217 = vld [vmem:[#allocation7 + $0x10] sm:$0xff]
    %v218 = vld [vmem:[#allocation7 + $0x18] sm:$0xff]
    %v219 = vld [vmem:[#allocation7 + $0x20] sm:$0xff]
    %v220 = vld [vmem:[#allocation7 + $0x28] sm:$0xff]
    %v221 = vld [vmem:[#allocation7 + $0x30] sm:$0xff]
    %v222 = vld [vmem:[#allocation7 + $0x38] sm:$0xff]
    %v223 = vld [vmem:[#allocation7 + $0x40] sm:$0xff]
    %v224 = vld [vmem:[#allocation7 + $0x48] sm:$0xff]
    %v225 = vld [vmem:[#allocation7 + $0x50] sm:$0xff]
    %v226 = vld [vmem:[#allocation7 + $0x58] sm:$0xff]
    %v227 = vld [vmem:[#allocation7 + $0x60] sm:$0xff]
    %v228 = vld [vmem:[#allocation7 + $0x68] sm:$0xff]
    %v229 = vld [vmem:[#allocation7 + $0x70] sm:$0xff]
    %v230 = vld [vmem:[#allocation7 + $0x78] sm:$0xff]
    %v231 = vld [vmem:[%s4] sm:$0x1]
    %v233 = vlaneseq
    %v234 = vshrl.u32 %v233, 7
    %v235 = vsub.s32 0, %v234
    %v236 = vrot.slane %v231, %v235
    %238 = vmatprep.subr.mxu0 0.0
    %239 = vmatpush1.msra.mxu0 %v215
    %240 = vmatprep.subr.mxu0 0.0
    %241 = vmatpush1.msra.mxu0 %v216
    %242 = vmatprep.subr.mxu0 0.0
    %243 = vmatpush1.msra.mxu0 %v217
    %244 = vmatprep.subr.mxu0 0.0
    %245 = vmatpush1.msra.mxu0 %v218
    %246 = vmatprep.subr.mxu0 0.0
    %247 = vmatpush1.msra.mxu0 %v219
    %248 = vmatprep.subr.mxu0 0.0
    %249 = vmatpush1.msra.mxu0 %v220
    %250 = vmatprep.subr.mxu0 0.0
    %251 = vmatpush1.msra.mxu0 %v221
    %252 = vmatprep.subr.mxu0 0.0
    %253 = vmatpush1.msra.mxu0 %v222
    %254 = vmatprep.subr.mxu0 0.0
    %255 = vmatpush1.msra.mxu0 %v223
    %256 = vmatprep.subr.mxu0 0.0
    %257 = vmatpush1.msra.mxu0 %v224
    %258 = vmatprep.subr.mxu0 0.0
    %259 = vmatpush1.msra.mxu0 %v225
    %260 = vmatprep.subr.mxu0 0.0
    %261 = vmatpush1.msra.mxu0 %v226
    %262 = vmatprep.subr.mxu0 0.0
    %263 = vmatpush1.msra.mxu0 %v227
    %264 = vmatprep.subr.mxu0 0.0
    %265 = vmatpush1.msra.mxu0 %v228
    %266 = vmatprep.subr.mxu0 0.0
    %267 = vmatpush1.msra.mxu0 %v229
    %268 = vmatprep.subr.mxu0 0.0
    %269 = vmatpush1.msra.mxu0 %v230
    %270 = vmatprep.subr.mxu0 0.0
    %271 = vmatpush1.msra.mxu0 0.0
    %272 = vmatprep.subr.mxu0 0.0
    %273 = vmatpush1.msra.mxu0 0.0
    %274 = vmatprep.subr.mxu0 0.0
    %275 = vmatpush1.msra.mxu0 0.0
    %276 = vmatprep.subr.mxu0 0.0
    %277 = vmatpush1.msra.mxu0 0.0
    %278 = vmatprep.subr.mxu0 0.0
    %279 = vmatpush1.msra.mxu0 0.0
    %280 = vmatprep.subr.mxu0 0.0
    %281 = vmatpush1.msra.mxu0 0.0
    %282 = vmatprep.subr.mxu0 0.0
    %283 = vmatpush1.msra.mxu0 0.0
    %284 = vmatprep.subr.mxu0 0.0
    %285 = vmatpush1.msra.mxu0 0.0
    %286 = vmatprep.subr.mxu0 0.0
    %287 = vmatpush1.msra.mxu0 0.0
    %288 = vmatprep.subr.mxu0 0.0
    %289 = vmatpush1.msra.mxu0 0.0
    %290 = vmatprep.subr.mxu0 0.0
    %291 = vmatpush1.msra.mxu0 0.0
    %292 = vmatprep.subr.mxu0 0.0
    %293 = vmatpush1.msra.mxu0 0.0
    %294 = vmatprep.subr.mxu0 0.0
    %295 = vmatpush1.msra.mxu0 0.0
    %296 = vmatprep.subr.mxu0 0.0
    %297 = vmatpush1.msra.mxu0 0.0
    %298 = vmatprep.subr.mxu0 0.0
    %299 = vmatpush1.msra.mxu0 0.0
    %300 = vmatprep.subr.mxu0 0.0
    %301 = vmatpush1.msra.mxu0 0.0
    %302 = vmatprep.mubr.f32.mxu0 0.0
    %303 = vmatmul.mubr.f32.gmra.mrb[0].mxu0 %v214
    %v304 = vpop.f32.mrb[0].mxu0
    %v305 = vadd.f32 %v236, %v304
    %v306 = vpop.f32.mrb[0].mxu0
    %307 = vdwg.mxu0
    %308 = vmax.xlane.f32.xlu0 %v305
    %v309 = vpop.xlane.xlu0 %308
    %v310 = vsub.f32 %v305, %v309
    %v311 = vmul.f32 %v310, 1.442695
    %v312 = vpow.pop %v311
    %313 = vadd.xlane.f32.xlu0 %v312
    %v314 = vpop.xlane.xlu0 %313
    %v315 = vlog2.pop %v314
    %v316 = vmul.f32 %v315, 0.6931472
    %v317 = vsub.f32 %v310, %v316
    %318 = vst [vmem:[#allocation8] sm:$0xff] %v317
    // Predicated region
    $region34: #{tpu_custom_call.1} parent=1 // pred_check
      _
    $region35: #{tpu_custom_call.1} parent=1 // pred_check_branch
      %320 = sbr.rel (0) target = $region37
    $region36: #{tpu_custom_call.1} parent=1 // pred_region
      %s322 = ssub.s32 128, 128
      %323 = vsyncadd [#allocation4], %s322
      %s325 = sshll.u32 [#allocation8], 4
      %s326 = int_to_ptr.vmem [resolvable:$true] %s325
      %328 = dma.vmem_to_hbm [thread:$0]  %s326, 128, %s5, [#allocation4]
    $region37: #{tpu_custom_call.1} parent=1 // pred_fallthru
      _
    // Predicated region
    $region38: #{tpu_custom_call.1} parent=1 // pred_check
      _
    $region39: #{tpu_custom_call.1} parent=1 // pred_check_branch
      %330 = sbr.rel (0) target = $region41
    $region40: #{tpu_custom_call.1} parent=1 // pred_region
      %331 = dma.done [#allocation4], 128
    $region41: #{tpu_custom_call.1} parent=1 // pred_fallthru
      _
    %332 = vsyncpa [#allocation3], 1
    %333 = vsyncpa [#allocation6], 1
    %334 = vsyncpa [#allocation4], 1

</llo_original>
